<compile_context>
chip_gen: v7x
topology: tpu7x:2x2x1
jax: 0.10.0
libtpu: 0.0.40
codegen_flags: <defaults>
</compile_context>

<pallas_src>
from functools import partial

import jax
import jax.numpy as jnp
from jax.experimental import pallas as pl
from jax.experimental.pallas import tpu as pltpu


_INT32_MAX = jnp.iinfo(jnp.int32).max


def _round_up(x, m):
    return (x + m - 1) // m * m


def _knn_topk_kernel(q_ref, x_ref, idx_ref, keytile_sc, key_sc, prev_sc,
                     need_sc, *, n_total, idx_bits, x_resident):
    """One (batch, M-tile, N-tile) grid step of fused distances + top-kk."""
    nj = pl.program_id(2)
    kk, tm = key_sc.shape
    tn = keytile_sc.shape[0]
    low_mask = (1 << idx_bits) - 1
    big = jnp.int32(_INT32_MAX)

    # ---- distance tile: (tn reference points on sublanes) x (tm queries on lanes)
    if x_resident:
        start = pl.multiple_of(nj * tn, tn)
        x = x_ref[pl.ds(start, tn), :]            # slice of the per-batch slab
    else:
        x = x_ref[...]                            # streamed (tn, 8) tile
    qT = q_ref[...]                               # (8, tm) transposed queries

    # Direct sum_c (x - q)^2 on the VPU: exact f32, no cancellation, no MXU
    # precision games (review: drop the HIGHEST-precision decomposition).
    d = None
    for c in range(3):
        diff = x[:, c:c + 1] - qT[c:c + 1, :]     # (tn,1) - (1,tm) -> (tn,tm)
        sq = diff * diff
        d = sq if d is None else d + sq           # (tn, tm), >= 0 exactly

    # Pack (distance, within-tile row id) into one monotone int32 key.  The
    # low idx_bits make keys unique per query, so extraction needs no tile
    # rewrites; exact distances are recomputed in the JAX tail.
    row_local = jax.lax.broadcasted_iota(jnp.int32, (tn, tm), 0)
    key = (pltpu.bitcast(d, jnp.int32) & jnp.int32(~low_mask)) | row_local
    gid_row = nj * tn + row_local
    key = jnp.where(gid_row < n_total, key, big)  # mask padded reference rows
    keytile_sc[...] = key

    # ---- init the running top-kk state at the first N tile of each (b, mi)
    @pl.when(nj == 0)
    def _init():
        key_sc[...] = jnp.full((kk, tm), big, jnp.int32)
        idx_ref[...] = jnp.zeros((kk, tm), jnp.int32)

    # ---- data-dependent merge trip count: this tile can improve a query's
    # top-kk at most min(kk, #keys below its current worst) times; take the
    # max over the tm queries and loop only that many times.
    best0 = key_sc[...]
    worst0 = jnp.max(best0, axis=0, keepdims=True)                    # (1, tm)
    cnt = jnp.sum((key < worst0).astype(jnp.int32), axis=0, keepdims=True)
    need_sc[...] = jnp.max(jnp.minimum(cnt, kk), axis=1, keepdims=True)
    need = need_sc[0, 0]                                              # scalar

    prev_sc[...] = jnp.full((1, tm), -1, jnp.int32)
    slot_ids = jax.lax.broadcasted_iota(jnp.int32, (kk, tm), 0)
    base = nj * tn

    # TODO(synk): loop unrolling is not applicable to a traced-bound loop; the
    # dynamic trip count already keeps the average iteration count small.
    @pl.loop(0, need)
    def _merge(_):
        kt = keytile_sc[...]                                          # (tn, tm)
        prev = prev_sc[...]                                           # (1, tm)
        # Next-smallest unseen key per query: one cross-sublane min, no rewrite.
        cand = jnp.min(jnp.where(kt > prev, kt, big), axis=0, keepdims=True)
        prev_sc[...] = cand
        best = key_sc[...]                                            # (kk, tm)
        worst = jnp.max(best, axis=0, keepdims=True)                  # (1, tm)
        wslot = jnp.min(jnp.where(best == worst, slot_ids, jnp.int32(kk)),
                        axis=0, keepdims=True)                        # (1, tm)
        upd = (slot_ids == wslot) & (cand < worst)                    # (kk, tm)
        key_sc[...] = jnp.where(upd, cand, best)
        idx_ref[...] = jnp.where(upd, base + (cand & jnp.int32(low_mask)),
                                 idx_ref[...])


def knn_topk_candidates(new_xyz, xyz, kk, tile_m=128, tile_n=512):
    """Fused pairwise squared distances + running top-kk selection.

    Returns (B, M, kk) int32 indices of the kk nearest reference points per
    query (unordered candidate set; the re-ranking tail recomputes exact
    distances and does not depend on the order).
    """
    assert tile_m % 128 == 0 and tile_n % 128 == 0
    B, M, _ = new_xyz.shape
    N = xyz.shape[1]
    assert kk <= N

    # Query (M) tiling.  NOTE(v7x megacore): with B == 1 and M <= tile_m the
    # grid has a single parallel block (one TensorCore); the lane-dense output
    # BlockSpec constrains tm to {Mp, multiples of 128}.
    if M <= tile_m:
        Mp = _round_up(M, 8)
        tm = Mp
    else:
        tm = tile_m
        Mp = _round_up(M, tm)
    # Reference (N) tiling.  tile_n=512 default; 256 is worth re-sweeping once
    # the dynamic trip count dominates (review item #10).
    if N <= tile_n:
        Np = _round_up(N, 128)
        tn = Np
    else:
        tn = tile_n
        Np = _round_up(N, tn)

    # Coordinates zero-padded to 8 (extra coords are zero so distances are
    # unchanged); padded reference rows are masked to +inf keys in-kernel.
    qT = jnp.zeros((B, 8, Mp), jnp.float32).at[:, :3, :M].set(
        jnp.transpose(new_xyz.astype(jnp.float32), (0, 2, 1)))
    x = jnp.zeros((B, Np, 8), jnp.float32).at[:, :N, :3].set(
        xyz.astype(jnp.float32))

    # Cache the whole per-batch reference slab in VMEM (fetched once per batch)
    # when it fits a conservative budget: the (Np, 8) block is lane-padded to
    # (Np, 128) f32 and double-buffered; the 8 MiB cap keeps the kernel well
    # inside v7x's 64 MiB VMEM / 32 MiB default scope (review items #7/#8).
    x_resident = (Np * 128 * 4 * 2) <= (8 * 1024 * 1024)
    if x_resident:
        x_spec = pl.BlockSpec((None, Np, 8), lambda b, mi, nj: (b, 0, 0))
    else:
        x_spec = pl.BlockSpec((None, tn, 8), lambda b, mi, nj: (b, nj, 0))

    idx_bits = max(1, (tn - 1).bit_length())   # low key bits holding the row id
    grid = (B, Mp // tm, Np // tn)

    idx_km = pl.pallas_call(
        partial(_knn_topk_kernel, n_total=N, idx_bits=idx_bits,
                x_resident=x_resident),
        out_shape=jax.ShapeDtypeStruct((B, kk, Mp), jnp.int32),
        grid_spec=pltpu.PrefetchScalarGridSpec(
            num_scalar_prefetch=0,
            grid=grid,
            in_specs=[
                pl.BlockSpec((None, 8, tm), lambda b, mi, nj: (b, 0, mi)),
                x_spec,
            ],
            out_specs=pl.BlockSpec((None, kk, tm), lambda b, mi, nj: (b, 0, mi)),
            scratch_shapes=[
                pltpu.VMEM((tn, tm), jnp.int32),   # packed key tile
                pltpu.VMEM((kk, tm), jnp.int32),   # running best keys (lane dense)
                pltpu.VMEM((1, tm), jnp.int32),    # last extracted key per query
                pltpu.VMEM((1, 1), jnp.int32),     # dynamic merge trip count
            ],
        ),
        compiler_params=pltpu.CompilerParams(
            dimension_semantics=("parallel", "parallel", "arbitrary")),
    )(qT, x)

    # (B, kk, Mp) lane-dense kernel output -> (B, M, kk); layout plumbing only.
    return jnp.transpose(idx_km, (0, 2, 1))[:, :M]


@partial(jax.jit, static_argnames=("k",))
def knn(xyz, new_xyz=None, k=16):
    """JAX/Pallas equivalent of KNN.forward. Returns (B, M, k) int32 indices."""
    if new_xyz is None:
        new_xyz = xyz
    N = xyz.shape[1]
    kk = min(2 * k, N)

    # (1)+(2): fused Pallas kernel -> kk candidate indices per query.
    top_idx = knn_topk_candidates(new_xyz, xyz, kk)                 # (B, M, kk)

    # (3)-(5): operate on the small (B, M, 2k) candidate set only.
    # TODO(synk): the mean/std/exp statistics and the argsort stay in plain JAX
    # (no Mosaic sort lowering); they touch only O(B*M*2k) elements.
    xyz_f = xyz.astype(jnp.float32)
    new_f = new_xyz.astype(jnp.float32)
    local = jnp.take_along_axis(xyz_f[:, None, :, :], top_idx[..., None],
                                axis=2)                             # (B,M,kk,3)
    # Exact squared distances recomputed here: the in-kernel packed keys drop
    # the low mantissa bits, so the final ranking must not use them.
    d_top = jnp.sum((local - new_f[:, :, None, :]) ** 2, axis=-1)   # (B,M,kk)
    local_mean = jnp.mean(local, axis=2, keepdims=True)             # (B,M,1,3)
    local_std = jnp.std(local, axis=2, ddof=1)                      # unbiased
    denom = jnp.mean(local_std + 1e-6, axis=-1, keepdims=True)      # (B,M,1)
    weights = jnp.exp(-jnp.sum((local - local_mean) ** 2, axis=-1) / denom)

    order = jnp.argsort(d_top * weights, axis=-1)[..., :k]
    idx = jnp.take_along_axis(top_idx, order, axis=-1)              # (B,M,k)
    # torch returns int64; JAX (x64 off) gives int32 -- same values.
    return idx.astype(jnp.int32)


def knn_reference(xyz, new_xyz, k):
    """Dense pure-JAX reference mirroring the torch loop (for validation)."""
    diff = new_xyz[:, :, None, :] - xyz[:, None, :, :]
    dist = jnp.sum(diff * diff, axis=-1)                            # (B, M, N)
    kk = min(2 * k, xyz.shape[1])
    neg, top_idx = jax.lax.top_k(-dist, kk)
    d_top = -neg
    local = jnp.take_along_axis(xyz[:, None], top_idx[..., None], axis=2)
    mean = jnp.mean(local, axis=2, keepdims=True)
    std = jnp.std(local, axis=2, ddof=1)
    denom = jnp.mean(std + 1e-6, axis=-1, keepdims=True)
    w = jnp.exp(-jnp.sum((local - mean) ** 2, axis=-1) / denom)
    order = jnp.argsort(d_top * w, axis=-1)[..., :k]
    return jnp.take_along_axis(top_idx, order, axis=-1)


if __name__ == "__main__":
    key = jax.random.PRNGKey(0)
    B, N, K = 2, 128, 16
    xyz = jax.random.normal(key, (B, N, 3), dtype=jnp.float32)

    idx = knn(xyz, k=K)
    jax.block_until_ready(idx)
    assert idx.shape == (B, N, K), idx.shape
    assert idx.dtype == jnp.int32
    assert bool(jnp.all((idx >= 0) & (idx < N)))
    # every query keeps itself among its k weighted-nearest neighbours
    self_in = (idx == jnp.arange(N)[None, :, None]).any(axis=-1)
    assert bool(jnp.all(self_in))
    ref = knn_reference(xyz, xyz, K)
    recall = jnp.mean((idx[..., :, None] == ref[..., None, :]).any(axis=-1))
    assert float(recall) > 0.98, float(recall)

    # non-tile-divisible shapes exercise the padding / +inf-key masking path
    xyz2 = jax.random.normal(jax.random.PRNGKey(1), (B, 100, 3), jnp.float32)
    new2 = xyz2[:, :60]
    idx2 = knn(xyz2, new2, k=K)
    jax.block_until_ready(idx2)
    assert idx2.shape == (B, 60, K), idx2.shape
    assert bool(jnp.all((idx2 >= 0) & (idx2 < 100)))
    ref2 = knn_reference(xyz2, new2, K)
    recall2 = jnp.mean((idx2[..., :, None] == ref2[..., None, :]).any(axis=-1))
    assert float(recall2) > 0.98, float(recall2)

    # N > tile_n exercises the multi-tile reduction, the resident-slab slicing
    # and the data-dependent merge trip count on the second N tile.
    xyz3 = jax.random.normal(jax.random.PRNGKey(2), (1, 1000, 3), jnp.float32)
    new3 = xyz3[:, :200]
    idx3 = knn(xyz3, new3, k=K)
    jax.block_until_ready(idx3)
    assert idx3.shape == (1, 200, K), idx3.shape
    assert bool(jnp.all((idx3 >= 0) & (idx3 < 1000)))
    ref3 = knn_reference(xyz3, new3, K)
    recall3 = jnp.mean((idx3[..., :, None] == ref3[..., None, :]).any(axis=-1))
    assert float(recall3) > 0.98, float(recall3)

    print("KERNEL_OK")
</pallas_src>

<mosaic_0001>
module attributes {stable_mosaic.version = 11 : i64} {
  func.func private @main(%arg0: i32) attributes {dimension_semantics = [#tpu.dimension_semantics<core_parallel>], iteration_bounds = array<i64: 2>, tpu.core_type = #tpu.core_type<sc_scalar_subcore>, window_params = []} {
    return
  }
}

module attributes {stable_mosaic.version = 11 : i64} {
  func.func private @main(%arg0: i32) attributes {dimension_semantics = [#tpu.dimension_semantics<core_parallel>], iteration_bounds = array<i64: 2>, tpu.core_type = #tpu.core_type<sc_scalar_subcore>, window_params = []} {
    return
  }
}

module attributes {stable_mosaic.version = 11 : i64} {
  func.func @_knn_topk_kernel(%arg0: i32, %arg1: i32, %arg2: i32, %arg3: memref<1x8x128xf32, #tpu.memory_space<vmem>>, %arg4: memref<1x128x8xf32, #tpu.memory_space<vmem>>, %arg5: memref<1x32x128xi32, #tpu.memory_space<vmem>>, %arg6: memref<128x128xi32, #tpu.memory_space<vmem>>, %arg7: memref<32x128xi32, #tpu.memory_space<vmem>>, %arg8: memref<1x128xi32, #tpu.memory_space<vmem>>, %arg9: memref<1x1xi32, #tpu.memory_space<vmem>>) attributes {dimension_semantics = [#tpu.dimension_semantics<parallel>, #tpu.dimension_semantics<parallel>, #tpu.dimension_semantics<arbitrary>], iteration_bounds = array<i64: 2, 1, 1>, scalar_prefetch = 0 : i64, scratch_operands = 4 : i64, tpu.core_type = #tpu.core_type<tc>, window_params = [{transform_indices = @transform_0, window_bounds = array<i64: 1, 8, 128>}, {transform_indices = @transform_1, window_bounds = array<i64: 1, 128, 8>}, {transform_indices = @transform_2, window_bounds = array<i64: 1, 32, 128>}]} {
    %c128_i32 = arith.constant 128 : i32
    %0 = arith.muli %arg2, %c128_i32 : i32
    %1 = tpu.assume_multiple %0, 128 : i32
    %c0 = arith.constant 0 : index
    %2 = arith.index_cast %1 : i32 to index
    %c0_0 = arith.constant 0 : index
    %3 = vector.load %arg4[%c0, %2, %c0_0] : memref<1x128x8xf32, #tpu.memory_space<vmem>>, vector<1x128x8xf32>
    %4 = vector.shape_cast %3 : vector<1x128x8xf32> to vector<128x8xf32>
    %c0_1 = arith.constant 0 : index
    %c0_2 = arith.constant 0 : index
    %c0_3 = arith.constant 0 : index
    %5 = vector.load %arg3[%c0_1, %c0_2, %c0_3] : memref<1x8x128xf32, #tpu.memory_space<vmem>>, vector<1x8x128xf32>
    %6 = vector.shape_cast %5 : vector<1x8x128xf32> to vector<8x128xf32>
    %7 = vector.extract_strided_slice %4 {offsets = [0, 0], sizes = [128, 1], strides = [1, 1]} : vector<128x8xf32> to vector<128x1xf32>
    %8 = vector.extract_strided_slice %6 {offsets = [0, 0], sizes = [1, 128], strides = [1, 1]} : vector<8x128xf32> to vector<1x128xf32>
    %9 = vector.broadcast %7 : vector<128x1xf32> to vector<128x128xf32>
    %10 = vector.broadcast %8 : vector<1x128xf32> to vector<128x128xf32>
    %11 = arith.subf %9, %10 : vector<128x128xf32>
    %12 = arith.mulf %11, %11 : vector<128x128xf32>
    %13 = vector.extract_strided_slice %4 {offsets = [0, 1], sizes = [128, 1], strides = [1, 1]} : vector<128x8xf32> to vector<128x1xf32>
    %14 = vector.extract_strided_slice %6 {offsets = [1, 0], sizes = [1, 128], strides = [1, 1]} : vector<8x128xf32> to vector<1x128xf32>
    %15 = vector.broadcast %13 : vector<128x1xf32> to vector<128x128xf32>
    %16 = vector.broadcast %14 : vector<1x128xf32> to vector<128x128xf32>
    %17 = arith.subf %15, %16 : vector<128x128xf32>
    %18 = arith.mulf %17, %17 : vector<128x128xf32>
    %19 = arith.addf %12, %18 : vector<128x128xf32>
    %20 = vector.extract_strided_slice %4 {offsets = [0, 2], sizes = [128, 1], strides = [1, 1]} : vector<128x8xf32> to vector<128x1xf32>
    %21 = vector.extract_strided_slice %6 {offsets = [2, 0], sizes = [1, 128], strides = [1, 1]} : vector<8x128xf32> to vector<1x128xf32>
    %22 = vector.broadcast %20 : vector<128x1xf32> to vector<128x128xf32>
    %23 = vector.broadcast %21 : vector<1x128xf32> to vector<128x128xf32>
    %24 = arith.subf %22, %23 : vector<128x128xf32>
    %25 = arith.mulf %24, %24 : vector<128x128xf32>
    %26 = arith.addf %19, %25 : vector<128x128xf32>
    %27 = tpu.iota {dimensions = array<i32: 0>} : vector<128x128xi32>
    %28 = tpu.bitcast %26 : vector<128x128xf32> -> vector<128x128xi32>
    %c-128_i32 = arith.constant -128 : i32
    %29 = vector.broadcast %c-128_i32 : i32 to vector<128x128xi32>
    %30 = arith.andi %28, %29 : vector<128x128xi32>
    %31 = arith.ori %30, %27 : vector<128x128xi32>
    %c128_i32_4 = arith.constant 128 : i32
    %32 = arith.muli %arg2, %c128_i32_4 : i32
    %33 = vector.broadcast %32 : i32 to vector<128x128xi32>
    %34 = arith.addi %33, %27 : vector<128x128xi32>
    %c128_i32_5 = arith.constant 128 : i32
    %35 = vector.broadcast %c128_i32_5 : i32 to vector<128x128xi32>
    %36 = arith.cmpi slt, %34, %35 : vector<128x128xi32>
    %c2147483647_i32 = arith.constant 2147483647 : i32
    %37 = vector.broadcast %c2147483647_i32 : i32 to vector<128x128xi32>
    %38 = arith.select %36, %31, %37 : vector<128x128xi1>, vector<128x128xi32>
    %c0_6 = arith.constant 0 : index
    %c0_7 = arith.constant 0 : index
    %39 = vector.load %arg6[%c0_6, %c0_7] : memref<128x128xi32, #tpu.memory_space<vmem>>, vector<128x128xi32>
    tpu.vector_store %arg6[%c0_6, %c0_7], %38 {strides = array<i32>} : memref<128x128xi32, #tpu.memory_space<vmem>>, vector<128x128xi32>,
    %c0_i32 = arith.constant 0 : i32
    %40 = arith.cmpi eq, %arg2, %c0_i32 : i32
    %41 = arith.extui %40 : i1 to i32
    %c2147483647_i32_8 = arith.constant 2147483647 : i32
    %c0_i32_9 = arith.constant 0 : i32
    %42 = arith.cmpi ne, %41, %c0_i32_9 : i32
    scf.if %42 {
      %68 = vector.broadcast %c2147483647_i32_8 : i32 to vector<32x128xi32>
      %c0_29 = arith.constant 0 : index
      %c0_30 = arith.constant 0 : index
      %69 = vector.load %arg7[%c0_29, %c0_30] : memref<32x128xi32, #tpu.memory_space<vmem>>, vector<32x128xi32>
      tpu.vector_store %arg7[%c0_29, %c0_30], %68 {strides = array<i32>} : memref<32x128xi32, #tpu.memory_space<vmem>>, vector<32x128xi32>,
      %c0_i32_31 = arith.constant 0 : i32
      %70 = vector.broadcast %c0_i32_31 : i32 to vector<32x128xi32>
      %c0_32 = arith.constant 0 : index
      %c0_33 = arith.constant 0 : index
      %c0_34 = arith.constant 0 : index
      %71 = vector.load %arg5[%c0_32, %c0_33, %c0_34] : memref<1x32x128xi32, #tpu.memory_space<vmem>>, vector<1x32x128xi32>
      %72 = vector.shape_cast %71 : vector<1x32x128xi32> to vector<32x128xi32>
      %73 = vector.shape_cast %70 : vector<32x128xi32> to vector<1x32x128xi32>
      tpu.vector_store %arg5[%c0_32, %c0_33, %c0_34], %73 {strides = array<i32>} : memref<1x32x128xi32, #tpu.memory_space<vmem>>, vector<1x32x128xi32>,
    } else {
    }
    %c0_10 = arith.constant 0 : index
    %c0_11 = arith.constant 0 : index
    %43 = vector.load %arg7[%c0_10, %c0_11] : memref<32x128xi32, #tpu.memory_space<vmem>>, vector<32x128xi32>
    %cst = arith.constant dense<-2147483648> : vector<128xi32>
    %44 = vector.multi_reduction <maxsi>, %43, %cst [0] : vector<32x128xi32> to vector<128xi32>
    %45 = vector.shape_cast %44 : vector<128xi32> to vector<1x128xi32>
    %46 = vector.broadcast %45 : vector<1x128xi32> to vector<128x128xi32>
    %47 = arith.cmpi slt, %38, %46 : vector<128x128xi32>
    %48 = arith.extui %47 : vector<128x128xi1> to vector<128x128xi32>
    %cst_12 = arith.constant dense<0> : vector<128xi32>
    %49 = vector.multi_reduction <add>, %48, %cst_12 [0] : vector<128x128xi32> to vector<128xi32>
    %50 = vector.shape_cast %49 : vector<128xi32> to vector<1x128xi32>
    %c32_i32 = arith.constant 32 : i32
    %51 = vector.broadcast %c32_i32 : i32 to vector<1x128xi32>
    %52 = arith.minsi %50, %51 : vector<1x128xi32>
    %cst_13 = arith.constant dense<-2147483648> : vector<1xi32>
    %53 = vector.multi_reduction <maxsi>, %52, %cst_13 [1] : vector<1x128xi32> to vector<1xi32>
    %54 = vector.shape_cast %53 : vector<1xi32> to vector<1x1xi32>
    %c0_14 = arith.constant 0 : index
    %c0_15 = arith.constant 0 : index
    %55 = vector.load %arg9[%c0_14, %c0_15] : memref<1x1xi32, #tpu.memory_space<vmem>>, vector<1x1xi32>
    tpu.vector_store %arg9[%c0_14, %c0_15], %54 {strides = array<i32>} : memref<1x1xi32, #tpu.memory_space<vmem>>, vector<1x1xi32>,
    %c0_16 = arith.constant 0 : index
    %c0_17 = arith.constant 0 : index
    %56 = vector.load %arg9[%c0_16, %c0_17] : memref<1x1xi32, #tpu.memory_space<vmem>>, vector<1x1xi32>
    %57 = vector.extract %56[0, 0] : i32 from vector<1x1xi32>
    %c-1_i32 = arith.constant -1 : i32
    %58 = vector.broadcast %c-1_i32 : i32 to vector<1x128xi32>
    %c0_18 = arith.constant 0 : index
    %c0_19 = arith.constant 0 : index
    %59 = vector.load %arg8[%c0_18, %c0_19] : memref<1x128xi32, #tpu.memory_space<vmem>>, vector<1x128xi32>
    tpu.vector_store %arg8[%c0_18, %c0_19], %58 {strides = array<i32>} : memref<1x128xi32, #tpu.memory_space<vmem>>, vector<1x128xi32>,
    %60 = tpu.iota {dimensions = array<i32: 0>} : vector<32x128xi32>
    %c128_i32_20 = arith.constant 128 : i32
    %61 = arith.muli %arg2, %c128_i32_20 : i32
    %c0_i32_21 = arith.constant 0 : i32
    %62 = arith.subi %57, %c0_i32_21 : i32
    %c1_i32 = arith.constant 1 : i32
    %c1_i32_22 = arith.constant 1 : i32
    %63 = arith.subi %c1_i32, %c1_i32_22 : i32
    %64 = arith.addi %62, %63 : i32
    %c1_i32_23 = arith.constant 1 : i32
    %65 = arith.divsi %64, %c1_i32_23 : i32
    %c1_i32_24 = arith.constant 1 : i32
    %c0_i32_25 = arith.constant 0 : i32
    %c2147483647_i32_26 = arith.constant 2147483647 : i32
    %c0_i32_27 = arith.constant 0 : i32
    %66 = arith.subi %65, %c0_i32_27 : i32
    %67 = arith.addi %c0_i32_27, %66 : i32
    %c1_i32_28 = arith.constant 1 : i32
    scf.for %arg10 = %c0_i32_27 to %67 step %c1_i32_28  : i32 {
      %68 = arith.muli %arg10, %c1_i32_24 : i32
      %69 = arith.addi %c0_i32_25, %68 : i32
      %c0_29 = arith.constant 0 : index
      %c0_30 = arith.constant 0 : index
      %70 = vector.load %arg6[%c0_29, %c0_30] : memref<128x128xi32, #tpu.memory_space<vmem>>, vector<128x128xi32>
      %c0_31 = arith.constant 0 : index
      %c0_32 = arith.constant 0 : index
      %71 = vector.load %arg8[%c0_31, %c0_32] : memref<1x128xi32, #tpu.memory_space<vmem>>, vector<1x128xi32>
      %72 = vector.broadcast %71 : vector<1x128xi32> to vector<128x128xi32>
      %73 = arith.cmpi sgt, %70, %72 : vector<128x128xi32>
      %74 = vector.broadcast %c2147483647_i32_26 : i32 to vector<128x128xi32>
      %75 = arith.select %73, %70, %74 : vector<128x128xi1>, vector<128x128xi32>
      %cst_33 = arith.constant dense<2147483647> : vector<128xi32>
      %76 = vector.multi_reduction <minsi>, %75, %cst_33 [0] : vector<128x128xi32> to vector<128xi32>
      %77 = vector.shape_cast %76 : vector<128xi32> to vector<1x128xi32>
      %c0_34 = arith.constant 0 : index
      %c0_35 = arith.constant 0 : index
      %78 = vector.load %arg8[%c0_34, %c0_35] : memref<1x128xi32, #tpu.memory_space<vmem>>, vector<1x128xi32>
      tpu.vector_store %arg8[%c0_34, %c0_35], %77 {strides = array<i32>} : memref<1x128xi32, #tpu.memory_space<vmem>>, vector<1x128xi32>,
      %c0_36 = arith.constant 0 : index
      %c0_37 = arith.constant 0 : index
      %79 = vector.load %arg7[%c0_36, %c0_37] : memref<32x128xi32, #tpu.memory_space<vmem>>, vector<32x128xi32>
      %cst_38 = arith.constant dense<-2147483648> : vector<128xi32>
      %80 = vector.multi_reduction <maxsi>, %79, %cst_38 [0] : vector<32x128xi32> to vector<128xi32>
      %81 = vector.shape_cast %80 : vector<128xi32> to vector<1x128xi32>
      %82 = vector.broadcast %81 : vector<1x128xi32> to vector<32x128xi32>
      %83 = arith.cmpi eq, %79, %82 : vector<32x128xi32>
      %c32_i32_39 = arith.constant 32 : i32
      %84 = vector.broadcast %c32_i32_39 : i32 to vector<32x128xi32>
      %85 = arith.select %83, %60, %84 : vector<32x128xi1>, vector<32x128xi32>
      %cst_40 = arith.constant dense<2147483647> : vector<128xi32>
      %86 = vector.multi_reduction <minsi>, %85, %cst_40 [0] : vector<32x128xi32> to vector<128xi32>
      %87 = vector.shape_cast %86 : vector<128xi32> to vector<1x128xi32>
      %88 = vector.broadcast %87 : vector<1x128xi32> to vector<32x128xi32>
      %89 = arith.cmpi eq, %60, %88 : vector<32x128xi32>
      %90 = arith.cmpi slt, %77, %81 : vector<1x128xi32>
      %91 = vector.broadcast %90 : vector<1x128xi1> to vector<32x128xi1>
      %92 = arith.andi %89, %91 : vector<32x128xi1>
      %93 = vector.shape_cast %77 : vector<1x128xi32> to vector<1x128xi32>
      %94 = vector.broadcast %93 : vector<1x128xi32> to vector<32x128xi32>
      %95 = arith.select %92, %94, %79 : vector<32x128xi1>, vector<32x128xi32>
      %c0_41 = arith.constant 0 : index
      %c0_42 = arith.constant 0 : index
      %96 = vector.load %arg7[%c0_41, %c0_42] : memref<32x128xi32, #tpu.memory_space<vmem>>, vector<32x128xi32>
      tpu.vector_store %arg7[%c0_41, %c0_42], %95 {strides = array<i32>} : memref<32x128xi32, #tpu.memory_space<vmem>>, vector<32x128xi32>,
      %c127_i32 = arith.constant 127 : i32
      %97 = vector.broadcast %c127_i32 : i32 to vector<1x128xi32>
      %98 = arith.andi %77, %97 : vector<1x128xi32>
      %99 = vector.broadcast %61 : i32 to vector<1x128xi32>
      %100 = arith.addi %99, %98 : vector<1x128xi32>
      %c0_43 = arith.constant 0 : index
      %c0_44 = arith.constant 0 : index
      %c0_45 = arith.constant 0 : index
      %101 = vector.load %arg5[%c0_43, %c0_44, %c0_45] : memref<1x32x128xi32, #tpu.memory_space<vmem>>, vector<1x32x128xi32>
      %102 = vector.shape_cast %101 : vector<1x32x128xi32> to vector<32x128xi32>
      %103 = vector.shape_cast %100 : vector<1x128xi32> to vector<1x128xi32>
      %104 = vector.broadcast %103 : vector<1x128xi32> to vector<32x128xi32>
      %105 = arith.select %92, %104, %102 : vector<32x128xi1>, vector<32x128xi32>
      %c0_46 = arith.constant 0 : index
      %c0_47 = arith.constant 0 : index
      %c0_48 = arith.constant 0 : index
      %106 = vector.load %arg5[%c0_46, %c0_47, %c0_48] : memref<1x32x128xi32, #tpu.memory_space<vmem>>, vector<1x32x128xi32>
      %107 = vector.shape_cast %106 : vector<1x32x128xi32> to vector<32x128xi32>
      %108 = vector.shape_cast %105 : vector<32x128xi32> to vector<1x32x128xi32>
      tpu.vector_store %arg5[%c0_46, %c0_47, %c0_48], %108 {strides = array<i32>} : memref<1x32x128xi32, #tpu.memory_space<vmem>>, vector<1x32x128xi32>,
    }
    return
  }
  func.func @transform_0(%arg0: i32, %arg1: i32, %arg2: i32) -> (i32, i32, i32) {
    %c0_i32 = arith.constant 0 : i32
    %c0_i32_0 = arith.constant 0 : i32
    return %arg0, %c0_i32, %arg1 : i32, i32, i32
  }
  func.func @transform_1(%arg0: i32, %arg1: i32, %arg2: i32) -> (i32, i32, i32) {
    %c0_i32 = arith.constant 0 : i32
    %c0_i32_0 = arith.constant 0 : i32
    %c0_i32_1 = arith.constant 0 : i32
    return %arg0, %c0_i32, %c0_i32_0 : i32, i32, i32
  }
  func.func @transform_2(%arg0: i32, %arg1: i32, %arg2: i32) -> (i32, i32, i32) {
    %c0_i32 = arith.constant 0 : i32
    %c0_i32_0 = arith.constant 0 : i32
    return %arg0, %c0_i32, %arg1 : i32, i32, i32
  }
}

</mosaic_0001>

<llo_original>
// kernel: knn.1
$region0: #{knn.1}
  #allocation0 [shape = 'u32[]', space=smem, size = 0x4, offset = 0x4, fixed_abs, tag = 'smem constant byte address 0x4 - core index']
  #allocation1 [shape = 'u32[144,128]{1,0:T(1,128)}', space=vmem, size = 0x12000, scoped, tag = 'internal scratch']
  #allocation2 [shape = 's32[128,128]{1,0:T(8,128)}', space=vmem, size = 0x10000, scoped, tag = 'scratch operand']
  #allocation3 [shape = 's32[32,128]{1,0:T(8,128)}', space=vmem, size = 0x4000, scoped, tag = 'scratch operand']
  #allocation4 [shape = 's32[1,128]{1,0:T(1,128)}', space=vmem, size = 0x200, scoped, tag = 'scratch operand']
  #allocation5 [shape = 's32[1,1]{1,0:T(1,128)}', space=vmem, size = 0x200, scoped, tag = 'scratch operand']
  %s0 = inlined_call_operand.vmem [shape: f32[2,8,128], index: 0, kind: input, shape index: {}]
  %s1 = inlined_call_operand.vmem [shape: f32[2,128,8], index: 1, kind: input, shape index: {}]
  %s2 = inlined_call_operand.vmem [shape: s32[2,32,128], index: 2, kind: output, shape index: {}]
  %s3 = sld [smem:[#allocation0]]
  $region52: #{knn.1} parent=0
    _
  %s5 = ssub.s32 1, %s3
  %s6 = scalar_select 0, %s5, %s3
  loop: start=0, step=1, limit=4
  $region2: #{knn.1} parent=0 // loop_pre_header
    _
  $region3: #{knn.1} parent=0 // loop_header
    %s8 = sphi 0, %s12
    %p9 = scmp.ge.s32.totalorder %s8, 4
    %s15 = sphi 0, %s34
    %s16 = sphi 0, %s30
    %s17 = sphi 0, %s26
    %s18 = sphi 0, %s15
    %s19 = sphi 0, %s16
    %s20 = sphi 0, %s17
    %s21 = sphi 0, %s18
    %s22 = sphi 0, %s19
    %s23 = sphi 0, %s20
    %s39 = sphi 0, %s41
    %s42 = sphi 0, %s39
    %s43 = sphi 0, %s42
    %s59 = sphi 0, %s43
    %s65 = sphi 0, %s67
    %s68 = sphi 0, %s65
    %s69 = sphi 0, %s68
    %s85 = sphi 0, %s69
    %s93 = sphi 0, %s95
    %s96 = sphi 0, %s93
    %s97 = sphi 0, %s96
    %s113 = sphi 0, %s97
  $region4: #{knn.1} parent=0 // loop_header_branch
    %11 = sbr.rel (%p9) target = $region8
  $region5: #{knn.1} parent=0 // loop_body
    %s13 = ssub.s32 %s8, 1
    %s14 = ssub.s32 %s8, 2
    %s24 = sadd.s32 1, %s17
    %p25 = scmp.ge.s32.totalorder %s24, 1
    %s26 = scalar_select %p25, 0, %s24
    %s27 = sadd.s32 1, %s16
    %s28 = scalar_select %p25, %s27, %s16
    %p29 = scmp.ge.s32.totalorder %s28, 1
    %s30 = scalar_select %p29, 0, %s28
    %s31 = sadd.s32 1, %s15
    %s32 = scalar_select %p29, %s31, %s15
    %p33 = scmp.ge.s32.totalorder %s32, 2
    %s34 = scalar_select %p33, 0, %s32
    %s35 = ssub.s32 %s15, %s34
    %s36 = ssub.s32 %s16, %s30
    %s37 = sor.u32 %s35, %s36
    %p38 = scmp.eq.s32.totalorder %s37, 0
    %s40 = sadd.s32 %s39, 1
    %s41 = scalar_select %p38, %s39, %s40
    %p44 = pneg %p38
    %p45 = scmp.eq.s32.totalorder %s8, 1
    %p46 = por %p44, %p45
    %p47 = scmp.ne.s32.totalorder %s39, %s42
    %p48 = scmp.eq.s32.totalorder %s8, 0
    %p49 = por %p47, %p48
    %p50 = scmp.ne.s32.totalorder %s39, %s42
    %p51 = scmp.eq.s32.totalorder %s13, 1
    %p52 = por %p50, %p51
    %p53 = scmp.ne.s32.totalorder %s42, %s43
    %p54 = scmp.eq.s32.totalorder %s13, 0
    %p55 = por %p53, %p54
    %p56 = scmp.ne.s32.totalorder %s42, %s43
    %p57 = scmp.eq.s32.totalorder %s14, 1
    %p58 = por %p56, %p57
    %p60 = scmp.ne.s32.totalorder %s43, %s59
    %p61 = scmp.eq.s32.totalorder %s14, 0
    %p62 = por %p60, %p61
    %s63 = ssub.s32 %s15, %s34
    %p64 = scmp.eq.s32.totalorder %s63, 0
    %s66 = sadd.s32 %s65, 1
    %s67 = scalar_select %p64, %s65, %s66
    %p70 = pneg %p64
    %p71 = scmp.eq.s32.totalorder %s8, 1
    %p72 = por %p70, %p71
    %p73 = scmp.ne.s32.totalorder %s65, %s68
    %p74 = scmp.eq.s32.totalorder %s8, 0
    %p75 = por %p73, %p74
    %p76 = scmp.ne.s32.totalorder %s65, %s68
    %p77 = scmp.eq.s32.totalorder %s13, 1
    %p78 = por %p76, %p77
    %p79 = scmp.ne.s32.totalorder %s68, %s69
    %p80 = scmp.eq.s32.totalorder %s13, 0
    %p81 = por %p79, %p80
    %p82 = scmp.ne.s32.totalorder %s68, %s69
    %p83 = scmp.eq.s32.totalorder %s14, 1
    %p84 = por %p82, %p83
    %p86 = scmp.ne.s32.totalorder %s69, %s85
    %p87 = scmp.eq.s32.totalorder %s14, 0
    %p88 = por %p86, %p87
    %s89 = ssub.s32 %s15, %s34
    %s90 = ssub.s32 %s16, %s30
    %s91 = sor.u32 %s89, %s90
    %p92 = scmp.eq.s32.totalorder %s91, 0
    %s94 = sadd.s32 %s93, 1
    %s95 = scalar_select %p92, %s93, %s94
    %p98 = pneg %p92
    %p99 = scmp.eq.s32.totalorder %s8, 1
    %p100 = por %p98, %p99
    %p101 = scmp.ne.s32.totalorder %s93, %s96
    %p102 = scmp.eq.s32.totalorder %s8, 0
    %p103 = por %p101, %p102
    %p104 = scmp.ne.s32.totalorder %s93, %s96
    %p105 = scmp.eq.s32.totalorder %s13, 1
    %p106 = por %p104, %p105
    %p107 = scmp.ne.s32.totalorder %s96, %s97
    %p108 = scmp.eq.s32.totalorder %s13, 0
    %p109 = por %p107, %p108
    %p110 = scmp.ne.s32.totalorder %s96, %s97
    %p111 = scmp.eq.s32.totalorder %s14, 1
    %p112 = por %p110, %p111
    %p114 = scmp.ne.s32.totalorder %s97, %s113
    %p115 = scmp.eq.s32.totalorder %s14, 0
    %p116 = por %p114, %p115
    %p117 = scmp.le.s32.totalorder 1, %s8
    %p118 = scmp.lt.s32.totalorder %s8, 3
    %p119 = pnand %p117, %p118
    %p120 = pneg %p119
    // Predicated region
    $region9: #{knn.1} parent=5 // pred_check
      _
    $region10: #{knn.1} parent=5 // pred_check_branch
      %122 = sbr.rel (%p119) target = $region12
    $region11: #{knn.1} parent=5 // pred_region
      %s123 = ssub.s32 %s8, 1
    $region12: #{knn.1} parent=5 // pred_fallthru
      _
    %p124 = scmp.lt.s32.totalorder %s8, 2
    // Predicated region
    $region13: #{knn.1} parent=5 // pred_check
      %p125 = pneg %p124
    $region14: #{knn.1} parent=5 // pred_check_branch
      %127 = sbr.rel (%p125) target = $region16
    $region15: #{knn.1} parent=5 // pred_region
      // Predicated region
      $region17: #{knn.1} parent=15 // pred_check
        %p128 = pneg %p49
      $region18: #{knn.1} parent=15 // pred_check_branch
        %130 = sbr.rel (%p128) target = $region20
      $region19: #{knn.1} parent=15 // pred_region
        %p131 = scmp.lt.s32.totalorder %s15, 1
        %s132 = scalar_select %p131, %s15, 1
        %p133 = scmp.lt.s32.totalorder %s16, 0
        %s134 = scalar_select %p133, %s16, 0
        %s135 = sadd.s32 %s134, %s132
        %s136 = smul.addr %s135, 8
        %s137 = scalar_lea.vmem %s0, %s136
      $region20: #{knn.1} parent=15 // pred_fallthru
        _
      // Predicated region
      $region21: #{knn.1} parent=15 // pred_check
        %p138 = pneg %p75
      $region22: #{knn.1} parent=15 // pred_check_branch
        %140 = sbr.rel (%p138) target = $region24
      $region23: #{knn.1} parent=15 // pred_region
        %p141 = scmp.lt.s32.totalorder %s15, 1
        %s142 = scalar_select %p141, %s15, 1
        %s143 = smul.addr %s142, 16
        %s144 = smul.addr %s143, 8
        %s145 = scalar_lea.vmem %s1, %s144
      $region24: #{knn.1} parent=15 // pred_fallthru
        _
    $region16: #{knn.1} parent=5 // pred_fallthru
      _
    %p146 = scmp.le.s32.totalorder 1, %s8
    %p147 = scmp.lt.s32.totalorder %s8, 3
    %p148 = pnand %p146, %p147
    %p149 = pneg %p148
    // Predicated region
    $region25: #{knn.1} parent=5 // pred_check
      _
    $region26: #{knn.1} parent=5 // pred_check_branch
      %151 = sbr.rel (%p148) target = $region28
    $region27: #{knn.1} parent=5 // pred_region
      %s152 = ssub.s32 %s8, 1
      %p153 = scmp.lt.s32.totalorder %s18, 1
      %s154 = scalar_select %p153, %s18, 1
      %p155 = scmp.lt.s32.totalorder %s19, 0
      %s156 = scalar_select %p155, %s19, 0
      %s157 = sadd.s32 %s156, %s154
      %s158 = smul.addr %s157, 8
      %s159 = scalar_lea.vmem %s0, %s158
      %p160 = pneg %p55
      %p161 = pneg %p52
      %p162 = scmp.lt.s32.totalorder %s18, 1
      %s163 = scalar_select %p162, %s18, 1
      %s164 = smul.addr %s163, 16
      %s165 = smul.addr %s164, 8
      %s166 = scalar_lea.vmem %s1, %s165
      %p167 = pneg %p81
      %p168 = pneg %p78
      %p169 = pneg %p109
      %p170 = pneg %p106
      %p171 = scmp.lt.s32.totalorder %s18, 1
      %s172 = scalar_select %p171, %s18, 1
      %p173 = scmp.lt.s32.totalorder %s19, 0
      %s174 = scalar_select %p173, %s19, 0
      %s175 = smul.addr %s172, 4
      %s176 = sadd.s32 %s174, %s175
      %s177 = smul.addr %s176, 8
      %s178 = scalar_lea.vmem %s2, %s177
      %p179 = scmp.lt.s32.totalorder %s18, 1
      %s180 = scalar_select %p179, %s18, 1
      %p181 = scmp.lt.s32.totalorder %s19, 0
      %s182 = scalar_select %p181, %s19, 0
      %s183 = sadd.s32 %s182, %s180
      %s184 = smul.addr %s183, 8
      %s185 = scalar_lea.vmem %s0, %s184
      %p186 = scmp.lt.s32.totalorder %s18, 1
      %s187 = scalar_select %p186, %s18, 1
      %s188 = smul.addr %s187, 16
      %s189 = smul.addr %s188, 8
      %s190 = scalar_lea.vmem %s1, %s189
      %p191 = scmp.lt.s32.totalorder %s18, 1
      %s192 = scalar_select %p191, %s18, 1
      %p193 = scmp.lt.s32.totalorder %s19, 0
      %s194 = scalar_select %p193, %s19, 0
      %s195 = smul.addr %s192, 4
      %s196 = sadd.s32 %s194, %s195
      %s197 = smul.addr %s196, 8
      %s198 = scalar_lea.vmem %s2, %s197
      %s199 = smul.u32 %s20, 128
      %s200 = scalar_lea.vmem %s190, %s199
      %v201 = vld [vmem:[%s200] sm:$0xff]
      %v202 = vld [vmem:[%s200 + $0x8] sm:$0xff]
      %v203 = vld [vmem:[%s200 + $0x10] sm:$0xff]
      %v204 = vld [vmem:[%s200 + $0x18] sm:$0xff]
      %v205 = vld [vmem:[%s200 + $0x20] sm:$0xff]
      %v206 = vld [vmem:[%s200 + $0x28] sm:$0xff]
      %v207 = vld [vmem:[%s200 + $0x30] sm:$0xff]
      %v208 = vld [vmem:[%s200 + $0x38] sm:$0xff]
      %v209 = vld [vmem:[%s200 + $0x40] sm:$0xff]
      %v210 = vld [vmem:[%s200 + $0x48] sm:$0xff]
      %v211 = vld [vmem:[%s200 + $0x50] sm:$0xff]
      %v212 = vld [vmem:[%s200 + $0x58] sm:$0xff]
      %v213 = vld [vmem:[%s200 + $0x60] sm:$0xff]
      %v214 = vld [vmem:[%s200 + $0x68] sm:$0xff]
      %v215 = vld [vmem:[%s200 + $0x70] sm:$0xff]
      %v216 = vld [vmem:[%s200 + $0x78] sm:$0xff]
      %v217 = vld [vmem:[%s185] sm:$0xff]
      %219 = vset.pattern.permute.xlu0 0
      %220 = vperm.xlu0 %219, %v201
      %v221 = vpop.permute.xlu0 %220
      %224 = vset.pattern.permute.xlu0 0
      %225 = vperm.xlu0 %224, %v202
      %v226 = vpop.permute.xlu0 %225
      %229 = vset.pattern.permute.xlu0 0
      %230 = vperm.xlu0 %229, %v203
      %v231 = vpop.permute.xlu0 %230
      %234 = vset.pattern.permute.xlu0 0
      %235 = vperm.xlu0 %234, %v204
      %v236 = vpop.permute.xlu0 %235
      %239 = vset.pattern.permute.xlu0 0
      %240 = vperm.xlu0 %239, %v205
      %v241 = vpop.permute.xlu0 %240
      %244 = vset.pattern.permute.xlu0 0
      %245 = vperm.xlu0 %244, %v206
      %v246 = vpop.permute.xlu0 %245
      %249 = vset.pattern.permute.xlu0 0
      %250 = vperm.xlu0 %249, %v207
      %v251 = vpop.permute.xlu0 %250
      %254 = vset.pattern.permute.xlu0 0
      %255 = vperm.xlu0 %254, %v208
      %v256 = vpop.permute.xlu0 %255
      %259 = vset.pattern.permute.xlu0 0
      %260 = vperm.xlu0 %259, %v209
      %v261 = vpop.permute.xlu0 %260
      %264 = vset.pattern.permute.xlu0 0
      %265 = vperm.xlu0 %264, %v210
      %v266 = vpop.permute.xlu0 %265
      %269 = vset.pattern.permute.xlu0 0
      %270 = vperm.xlu0 %269, %v211
      %v271 = vpop.permute.xlu0 %270
      %274 = vset.pattern.permute.xlu0 0
      %275 = vperm.xlu0 %274, %v212
      %v276 = vpop.permute.xlu0 %275
      %279 = vset.pattern.permute.xlu0 0
      %280 = vperm.xlu0 %279, %v213
      %v281 = vpop.permute.xlu0 %280
      %284 = vset.pattern.permute.xlu0 0
      %285 = vperm.xlu0 %284, %v214
      %v286 = vpop.permute.xlu0 %285
      %289 = vset.pattern.permute.xlu0 0
      %290 = vperm.xlu0 %289, %v215
      %v291 = vpop.permute.xlu0 %290
      %294 = vset.pattern.permute.xlu0 0
      %295 = vperm.xlu0 %294, %v216
      %v296 = vpop.permute.xlu0 %295
      %v298 = vlaneseq
      %v299 = vshrl.u32 %v298, 7
      %v300 = vsub.s32 0, %v299
      %v301 = vrot.slane %v217, %v300
      %v302 = vsub.f32 %v221, %v301
      %v303 = vsub.f32 %v226, %v301
      %v304 = vsub.f32 %v231, %v301
      %v305 = vsub.f32 %v236, %v301
      %v306 = vsub.f32 %v241, %v301
      %v307 = vsub.f32 %v246, %v301
      %v308 = vsub.f32 %v251, %v301
      %v309 = vsub.f32 %v256, %v301
      %v310 = vsub.f32 %v261, %v301
      %v311 = vsub.f32 %v266, %v301
      %v312 = vsub.f32 %v271, %v301
      %v313 = vsub.f32 %v276, %v301
      %v314 = vsub.f32 %v281, %v301
      %v315 = vsub.f32 %v286, %v301
      %v316 = vsub.f32 %v291, %v301
      %v317 = vsub.f32 %v296, %v301
      %v318 = vmul.f32 %v302, %v302
      %v319 = vmul.f32 %v303, %v303
      %v320 = vmul.f32 %v304, %v304
      %v321 = vmul.f32 %v305, %v305
      %v322 = vmul.f32 %v306, %v306
      %v323 = vmul.f32 %v307, %v307
      %v324 = vmul.f32 %v308, %v308
      %v325 = vmul.f32 %v309, %v309
      %v326 = vmul.f32 %v310, %v310
      %v327 = vmul.f32 %v311, %v311
      %v328 = vmul.f32 %v312, %v312
      %v329 = vmul.f32 %v313, %v313
      %v330 = vmul.f32 %v314, %v314
      %v331 = vmul.f32 %v315, %v315
      %v332 = vmul.f32 %v316, %v316
      %v333 = vmul.f32 %v317, %v317
      %334 = vset.pattern.permute.xlu0 1
      %335 = vperm.xlu0 %334, %v201
      %v336 = vpop.permute.xlu0 %335
      %338 = vset.pattern.permute.xlu0 1
      %339 = vperm.xlu0 %338, %v202
      %v340 = vpop.permute.xlu0 %339
      %342 = vset.pattern.permute.xlu0 1
      %343 = vperm.xlu0 %342, %v203
      %v344 = vpop.permute.xlu0 %343
      %346 = vset.pattern.permute.xlu0 1
      %347 = vperm.xlu0 %346, %v204
      %v348 = vpop.permute.xlu0 %347
      %350 = vset.pattern.permute.xlu0 1
      %351 = vperm.xlu0 %350, %v205
      %v352 = vpop.permute.xlu0 %351
      %354 = vset.pattern.permute.xlu0 1
      %355 = vperm.xlu0 %354, %v206
      %v356 = vpop.permute.xlu0 %355
      %358 = vset.pattern.permute.xlu0 1
      %359 = vperm.xlu0 %358, %v207
      %v360 = vpop.permute.xlu0 %359
      %362 = vset.pattern.permute.xlu0 1
      %363 = vperm.xlu0 %362, %v208
      %v364 = vpop.permute.xlu0 %363
      %366 = vset.pattern.permute.xlu0 1
      %367 = vperm.xlu0 %366, %v209
      %v368 = vpop.permute.xlu0 %367
      %370 = vset.pattern.permute.xlu0 1
      %371 = vperm.xlu0 %370, %v210
      %v372 = vpop.permute.xlu0 %371
      %374 = vset.pattern.permute.xlu0 1
      %375 = vperm.xlu0 %374, %v211
      %v376 = vpop.permute.xlu0 %375
      %378 = vset.pattern.permute.xlu0 1
      %379 = vperm.xlu0 %378, %v212
      %v380 = vpop.permute.xlu0 %379
      %382 = vset.pattern.permute.xlu0 1
      %383 = vperm.xlu0 %382, %v213
      %v384 = vpop.permute.xlu0 %383
      %386 = vset.pattern.permute.xlu0 1
      %387 = vperm.xlu0 %386, %v214
      %v388 = vpop.permute.xlu0 %387
      %390 = vset.pattern.permute.xlu0 1
      %391 = vperm.xlu0 %390, %v215
      %v392 = vpop.permute.xlu0 %391
      %394 = vset.pattern.permute.xlu0 1
      %395 = vperm.xlu0 %394, %v216
      %v396 = vpop.permute.xlu0 %395
      %v398 = vlaneseq
      %v399 = vshrl.u32 %v398, 7
      %v400 = vsub.s32 1, %v399
      %v401 = vrot.slane %v217, %v400
      %v402 = vsub.f32 %v336, %v401
      %v403 = vsub.f32 %v340, %v401
      %v404 = vsub.f32 %v344, %v401
      %v405 = vsub.f32 %v348, %v401
      %v406 = vsub.f32 %v352, %v401
      %v407 = vsub.f32 %v356, %v401
      %v408 = vsub.f32 %v360, %v401
      %v409 = vsub.f32 %v364, %v401
      %v410 = vsub.f32 %v368, %v401
      %v411 = vsub.f32 %v372, %v401
      %v412 = vsub.f32 %v376, %v401
      %v413 = vsub.f32 %v380, %v401
      %v414 = vsub.f32 %v384, %v401
      %v415 = vsub.f32 %v388, %v401
      %v416 = vsub.f32 %v392, %v401
      %v417 = vsub.f32 %v396, %v401
      %v418 = vmul.f32 %v402, %v402
      %v419 = vmul.f32 %v403, %v403
      %v420 = vmul.f32 %v404, %v404
      %v421 = vmul.f32 %v405, %v405
      %v422 = vmul.f32 %v406, %v406
      %v423 = vmul.f32 %v407, %v407
      %v424 = vmul.f32 %v408, %v408
      %v425 = vmul.f32 %v409, %v409
      %v426 = vmul.f32 %v410, %v410
      %v427 = vmul.f32 %v411, %v411
      %v428 = vmul.f32 %v412, %v412
      %v429 = vmul.f32 %v413, %v413
      %v430 = vmul.f32 %v414, %v414
      %v431 = vmul.f32 %v415, %v415
      %v432 = vmul.f32 %v416, %v416
      %v433 = vmul.f32 %v417, %v417
      %v434 = vadd.f32 %v318, %v418
      %v435 = vadd.f32 %v319, %v419
      %v436 = vadd.f32 %v320, %v420
      %v437 = vadd.f32 %v321, %v421
      %v438 = vadd.f32 %v322, %v422
      %v439 = vadd.f32 %v323, %v423
      %v440 = vadd.f32 %v324, %v424
      %v441 = vadd.f32 %v325, %v425
      %v442 = vadd.f32 %v326, %v426
      %v443 = vadd.f32 %v327, %v427
      %v444 = vadd.f32 %v328, %v428
      %v445 = vadd.f32 %v329, %v429
      %v446 = vadd.f32 %v330, %v430
      %v447 = vadd.f32 %v331, %v431
      %v448 = vadd.f32 %v332, %v432
      %v449 = vadd.f32 %v333, %v433
      %450 = vset.pattern.permute.xlu0 2
      %451 = vperm.xlu0 %450, %v201
      %v452 = vpop.permute.xlu0 %451
      %454 = vset.pattern.permute.xlu0 2
      %455 = vperm.xlu0 %454, %v202
      %v456 = vpop.permute.xlu0 %455
      %458 = vset.pattern.permute.xlu0 2
      %459 = vperm.xlu0 %458, %v203
      %v460 = vpop.permute.xlu0 %459
      %462 = vset.pattern.permute.xlu0 2
      %463 = vperm.xlu0 %462, %v204
      %v464 = vpop.permute.xlu0 %463
      %466 = vset.pattern.permute.xlu0 2
      %467 = vperm.xlu0 %466, %v205
      %v468 = vpop.permute.xlu0 %467
      %470 = vset.pattern.permute.xlu0 2
      %471 = vperm.xlu0 %470, %v206
      %v472 = vpop.permute.xlu0 %471
      %474 = vset.pattern.permute.xlu0 2
      %475 = vperm.xlu0 %474, %v207
      %v476 = vpop.permute.xlu0 %475
      %478 = vset.pattern.permute.xlu0 2
      %479 = vperm.xlu0 %478, %v208
      %v480 = vpop.permute.xlu0 %479
      %482 = vset.pattern.permute.xlu0 2
      %483 = vperm.xlu0 %482, %v209
      %v484 = vpop.permute.xlu0 %483
      %486 = vset.pattern.permute.xlu0 2
      %487 = vperm.xlu0 %486, %v210
      %v488 = vpop.permute.xlu0 %487
      %490 = vset.pattern.permute.xlu0 2
      %491 = vperm.xlu0 %490, %v211
      %v492 = vpop.permute.xlu0 %491
      %494 = vset.pattern.permute.xlu0 2
      %495 = vperm.xlu0 %494, %v212
      %v496 = vpop.permute.xlu0 %495
      %498 = vset.pattern.permute.xlu0 2
      %499 = vperm.xlu0 %498, %v213
      %v500 = vpop.permute.xlu0 %499
      %502 = vset.pattern.permute.xlu0 2
      %503 = vperm.xlu0 %502, %v214
      %v504 = vpop.permute.xlu0 %503
      %506 = vset.pattern.permute.xlu0 2
      %507 = vperm.xlu0 %506, %v215
      %v508 = vpop.permute.xlu0 %507
      %510 = vset.pattern.permute.xlu0 2
      %511 = vperm.xlu0 %510, %v216
      %v512 = vpop.permute.xlu0 %511
      %v514 = vlaneseq
      %v515 = vshrl.u32 %v514, 7
      %v516 = vsub.s32 2, %v515
      %v517 = vrot.slane %v217, %v516
      %v518 = vsub.f32 %v452, %v517
      %v519 = vsub.f32 %v456, %v517
      %v520 = vsub.f32 %v460, %v517
      %v521 = vsub.f32 %v464, %v517
      %v522 = vsub.f32 %v468, %v517
      %v523 = vsub.f32 %v472, %v517
      %v524 = vsub.f32 %v476, %v517
      %v525 = vsub.f32 %v480, %v517
      %v526 = vsub.f32 %v484, %v517
      %v527 = vsub.f32 %v488, %v517
      %v528 = vsub.f32 %v492, %v517
      %v529 = vsub.f32 %v496, %v517
      %v530 = vsub.f32 %v500, %v517
      %v531 = vsub.f32 %v504, %v517
      %v532 = vsub.f32 %v508, %v517
      %v533 = vsub.f32 %v512, %v517
      %v534 = vmul.f32 %v518, %v518
      %v535 = vmul.f32 %v519, %v519
      %v536 = vmul.f32 %v520, %v520
      %v537 = vmul.f32 %v521, %v521
      %v538 = vmul.f32 %v522, %v522
      %v539 = vmul.f32 %v523, %v523
      %v540 = vmul.f32 %v524, %v524
      %v541 = vmul.f32 %v525, %v525
      %v542 = vmul.f32 %v526, %v526
      %v543 = vmul.f32 %v527, %v527
      %v544 = vmul.f32 %v528, %v528
      %v545 = vmul.f32 %v529, %v529
      %v546 = vmul.f32 %v530, %v530
      %v547 = vmul.f32 %v531, %v531
      %v548 = vmul.f32 %v532, %v532
      %v549 = vmul.f32 %v533, %v533
      %v550 = vadd.f32 %v434, %v534
      %v551 = vadd.f32 %v435, %v535
      %v552 = vadd.f32 %v436, %v536
      %v553 = vadd.f32 %v437, %v537
      %v554 = vadd.f32 %v438, %v538
      %v555 = vadd.f32 %v439, %v539
      %v556 = vadd.f32 %v440, %v540
      %v557 = vadd.f32 %v441, %v541
      %v558 = vadd.f32 %v442, %v542
      %v559 = vadd.f32 %v443, %v543
      %v560 = vadd.f32 %v444, %v544
      %v561 = vadd.f32 %v445, %v545
      %v562 = vadd.f32 %v446, %v546
      %v563 = vadd.f32 %v447, %v547
      %v564 = vadd.f32 %v448, %v548
      %v565 = vadd.f32 %v449, %v549
      %v566 = vlaneseq
      %v567 = vshrl.u32 %v566, 7
      %v568 = vadd.s32 %v567, 8
      %v569 = vadd.s32 %v567, 16
      %v570 = vadd.s32 %v567, 24
      %v571 = vadd.s32 %v567, 32
      %v572 = vadd.s32 %v567, 40
      %v573 = vadd.s32 %v567, 48
      %v574 = vadd.s32 %v567, 56
      %v575 = vadd.s32 %v567, 64
      %v576 = vadd.s32 %v567, 72
      %v577 = vadd.s32 %v567, 80
      %v578 = vadd.s32 %v567, 88
      %v579 = vadd.s32 %v567, 96
      %v580 = vadd.s32 %v567, 104
      %v581 = vadd.s32 %v567, 112
      %v582 = vadd.s32 %v567, 120
      %v599 = vand.u32 %v550, 4294967168
      %v600 = vand.u32 %v551, 4294967168
      %v601 = vand.u32 %v552, 4294967168
      %v602 = vand.u32 %v553, 4294967168
      %v603 = vand.u32 %v554, 4294967168
      %v604 = vand.u32 %v555, 4294967168
      %v605 = vand.u32 %v556, 4294967168
      %v606 = vand.u32 %v557, 4294967168
      %v607 = vand.u32 %v558, 4294967168
      %v608 = vand.u32 %v559, 4294967168
      %v609 = vand.u32 %v560, 4294967168
      %v610 = vand.u32 %v561, 4294967168
      %v611 = vand.u32 %v562, 4294967168
      %v612 = vand.u32 %v563, 4294967168
      %v613 = vand.u32 %v564, 4294967168
      %v614 = vand.u32 %v565, 4294967168
      %v615 = vor.u32 %v599, %v567
      %v616 = vor.u32 %v600, %v568
      %v617 = vor.u32 %v601, %v569
      %v618 = vor.u32 %v602, %v570
      %v619 = vor.u32 %v603, %v571
      %v620 = vor.u32 %v604, %v572
      %v621 = vor.u32 %v605, %v573
      %v622 = vor.u32 %v606, %v574
      %v623 = vor.u32 %v607, %v575
      %v624 = vor.u32 %v608, %v576
      %v625 = vor.u32 %v609, %v577
      %v626 = vor.u32 %v610, %v578
      %v627 = vor.u32 %v611, %v579
      %v628 = vor.u32 %v612, %v580
      %v629 = vor.u32 %v613, %v581
      %v630 = vor.u32 %v614, %v582
      %v631 = vstv %s199
      %v632 = vadd.s32 %v631, %v567
      %v633 = vadd.s32 %v631, %v568
      %v634 = vadd.s32 %v631, %v569
      %v635 = vadd.s32 %v631, %v570
      %v636 = vadd.s32 %v631, %v571
      %v637 = vadd.s32 %v631, %v572
      %v638 = vadd.s32 %v631, %v573
      %v639 = vadd.s32 %v631, %v574
      %v640 = vadd.s32 %v631, %v575
      %v641 = vadd.s32 %v631, %v576
      %v642 = vadd.s32 %v631, %v577
      %v643 = vadd.s32 %v631, %v578
      %v644 = vadd.s32 %v631, %v579
      %v645 = vadd.s32 %v631, %v580
      %v646 = vadd.s32 %v631, %v581
      %v647 = vadd.s32 %v631, %v582
      %vm648 = vcmp.lt.s32.totalorder %v632, 128
      %vm649 = vcmp.lt.s32.totalorder %v633, 128
      %vm650 = vcmp.lt.s32.totalorder %v634, 128
      %vm651 = vcmp.lt.s32.totalorder %v635, 128
      %vm652 = vcmp.lt.s32.totalorder %v636, 128
      %vm653 = vcmp.lt.s32.totalorder %v637, 128
      %vm654 = vcmp.lt.s32.totalorder %v638, 128
      %vm655 = vcmp.lt.s32.totalorder %v639, 128
      %vm656 = vcmp.lt.s32.totalorder %v640, 128
      %vm657 = vcmp.lt.s32.totalorder %v641, 128
      %vm658 = vcmp.lt.s32.totalorder %v642, 128
      %vm659 = vcmp.lt.s32.totalorder %v643, 128
      %vm660 = vcmp.lt.s32.totalorder %v644, 128
      %vm661 = vcmp.lt.s32.totalorder %v645, 128
      %vm662 = vcmp.lt.s32.totalorder %v646, 128
      %vm663 = vcmp.lt.s32.totalorder %v647, 128
      %v664 = vsel %vm648, %v615, 2147483647
      %v665 = vsel %vm649, %v616, 2147483647
      %v666 = vsel %vm650, %v617, 2147483647
      %v667 = vsel %vm651, %v618, 2147483647
      %v668 = vsel %vm652, %v619, 2147483647
      %v669 = vsel %vm653, %v620, 2147483647
      %v670 = vsel %vm654, %v621, 2147483647
      %v671 = vsel %vm655, %v622, 2147483647
      %v672 = vsel %vm656, %v623, 2147483647
      %v673 = vsel %vm657, %v624, 2147483647
      %v674 = vsel %vm658, %v625, 2147483647
      %v675 = vsel %vm659, %v626, 2147483647
      %v676 = vsel %vm660, %v627, 2147483647
      %v677 = vsel %vm661, %v628, 2147483647
      %v678 = vsel %vm662, %v629, 2147483647
      %v679 = vsel %vm663, %v630, 2147483647
      %680 = vst [vmem:[#allocation2] sm:$0xff] %v664
      %681 = vst [vmem:[#allocation2 + $0x8] sm:$0xff] %v665
      %682 = vst [vmem:[#allocation2 + $0x10] sm:$0xff] %v666
      %683 = vst [vmem:[#allocation2 + $0x18] sm:$0xff] %v667
      %684 = vst [vmem:[#allocation2 + $0x20] sm:$0xff] %v668
      %685 = vst [vmem:[#allocation2 + $0x28] sm:$0xff] %v669
      %686 = vst [vmem:[#allocation2 + $0x30] sm:$0xff] %v670
      %687 = vst [vmem:[#allocation2 + $0x38] sm:$0xff] %v671
      %688 = vst [vmem:[#allocation2 + $0x40] sm:$0xff] %v672
      %689 = vst [vmem:[#allocation2 + $0x48] sm:$0xff] %v673
      %690 = vst [vmem:[#allocation2 + $0x50] sm:$0xff] %v674
      %691 = vst [vmem:[#allocation2 + $0x58] sm:$0xff] %v675
      %692 = vst [vmem:[#allocation2 + $0x60] sm:$0xff] %v676
      %693 = vst [vmem:[#allocation2 + $0x68] sm:$0xff] %v677
      %694 = vst [vmem:[#allocation2 + $0x70] sm:$0xff] %v678
      %695 = vst [vmem:[#allocation2 + $0x78] sm:$0xff] %v679
      %p696 = scmp.eq.s32.totalorder %s20, 0
      // Predicated region
      $region29: #{knn.1} parent=27 // pred_check
        %p697 = pneg %p696
      $region30: #{knn.1} parent=27 // pred_check_branch
        %699 = sbr.rel (%p697) target = $region32
      $region31: #{knn.1} parent=27 // pred_region
        %700 = vst [vmem:[#allocation3] sm:$0xff] 2147483647
        %701 = vst [vmem:[#allocation3 + $0x8] sm:$0xff] 2147483647
        %702 = vst [vmem:[#allocation3 + $0x10] sm:$0xff] 2147483647
        %703 = vst [vmem:[#allocation3 + $0x18] sm:$0xff] 2147483647
        %704 = vst [vmem:[%s198] sm:$0xff] 0
        %705 = vst [vmem:[%s198 + $0x8] sm:$0xff] 0
        %706 = vst [vmem:[%s198 + $0x10] sm:$0xff] 0
        %707 = vst [vmem:[%s198 + $0x18] sm:$0xff] 0
      $region32: #{knn.1} parent=27 // pred_fallthru
        _
      %v708 = vld [vmem:[#allocation3] sm:$0xff]
      %v709 = vld [vmem:[#allocation3 + $0x8] sm:$0xff]
      %v710 = vld [vmem:[#allocation3 + $0x10] sm:$0xff]
      %v711 = vld [vmem:[#allocation3 + $0x18] sm:$0xff]
      %vm712 = vcmp.gt.s32.totalorder %v708, %v709
      %v713 = vsel %vm712, %v708, %v709
      %vm714 = vcmp.gt.s32.totalorder %v710, %v711
      %v715 = vsel %vm714, %v710, %v711
      %vm716 = vcmp.gt.s32.totalorder %v713, %v715
      %v717 = vsel %vm716, %v713, %v715
      %v718 = vrot.slane %v717, 4
      %vm719 = vcmp.gt.s32.totalorder %v717, %v718
      %v720 = vsel %vm719, %v717, %v718
      %v721 = vrot.slane %v720, 2
      %vm722 = vcmp.gt.s32.totalorder %v720, %v721
      %v723 = vsel %vm722, %v720, %v721
      %v724 = vrot.slane %v723, 1
      %vm725 = vcmp.gt.s32.totalorder %v723, %v724
      %v726 = vsel %vm725, %v723, %v724
      %vm727 = vcmp.lt.s32.totalorder %v664, %v726
      %vm728 = vcmp.lt.s32.totalorder %v665, %v726
      %vm729 = vcmp.lt.s32.totalorder %v666, %v726
      %vm730 = vcmp.lt.s32.totalorder %v667, %v726
      %vm731 = vcmp.lt.s32.totalorder %v668, %v726
      %vm732 = vcmp.lt.s32.totalorder %v669, %v726
      %vm733 = vcmp.lt.s32.totalorder %v670, %v726
      %vm734 = vcmp.lt.s32.totalorder %v671, %v726
      %vm735 = vcmp.lt.s32.totalorder %v672, %v726
      %vm736 = vcmp.lt.s32.totalorder %v673, %v726
      %vm737 = vcmp.lt.s32.totalorder %v674, %v726
      %vm738 = vcmp.lt.s32.totalorder %v675, %v726
      %vm739 = vcmp.lt.s32.totalorder %v676, %v726
      %vm740 = vcmp.lt.s32.totalorder %v677, %v726
      %vm741 = vcmp.lt.s32.totalorder %v678, %v726
      %vm742 = vcmp.lt.s32.totalorder %v679, %v726
      %v743 = vsel %vm727, 1, 0
      %v744 = vsel %vm728, 1, 0
      %v745 = vsel %vm729, 1, 0
      %v746 = vsel %vm730, 1, 0
      %v747 = vsel %vm731, 1, 0
      %v748 = vsel %vm732, 1, 0
      %v749 = vsel %vm733, 1, 0
      %v750 = vsel %vm734, 1, 0
      %v751 = vsel %vm735, 1, 0
      %v752 = vsel %vm736, 1, 0
      %v753 = vsel %vm737, 1, 0
      %v754 = vsel %vm738, 1, 0
      %v755 = vsel %vm739, 1, 0
      %v756 = vsel %vm740, 1, 0
      %v757 = vsel %vm741, 1, 0
      %v758 = vsel %vm742, 1, 0
      %v759 = vadd.s32 %v743, %v747
      %v760 = vadd.s32 %v744, %v748
      %v761 = vadd.s32 %v745, %v749
      %v762 = vadd.s32 %v746, %v750
      %v763 = vadd.s32 %v759, %v751
      %v764 = vadd.s32 %v760, %v752
      %v765 = vadd.s32 %v761, %v753
      %v766 = vadd.s32 %v762, %v754
      %v767 = vadd.s32 %v763, %v755
      %v768 = vadd.s32 %v764, %v756
      %v769 = vadd.s32 %v765, %v757
      %v770 = vadd.s32 %v766, %v758
      %v771 = vadd.s32 %v767, %v768
      %v772 = vadd.s32 %v769, %v770
      %v773 = vadd.s32 %v771, %v772
      %v774 = vrot.slane %v773, 4
      %v775 = vadd.s32 %v773, %v774
      %v776 = vrot.slane %v775, 2
      %v777 = vadd.s32 %v775, %v776
      %v778 = vrot.slane %v777, 1
      %v779 = vadd.s32 %v777, %v778
      %vm780 = vcmp.lt.s32.totalorder %v779, 32
      %v781 = vsel %vm780, %v779, 32
      %v782 = vand.u32 %v781, 65535
      %v783 = vshra.s32 %v781, 16
      %v784 = vcvt.s32.f32 %v782
      %v785 = vcvt.s32.f32 %v783
      %786 = vmax.xlane.f32.xlu0 %v785
      %v787 = vpop.xlane.xlu0 %786
      %vm788 = vcmp.eq.f32.partialorder %v785, %v787
      %v789 = vsel %vm788, %v784, -inf
      %790 = vmax.xlane.f32.xlu0 %v789
      %v791 = vpop.xlane.xlu0 %790
      %v792 = vcvt.f32.s32 %v791
      %v793 = vcvt.f32.s32 %v787
      %v794 = vshll.u32 %v793, 16
      %v795 = vadd.s32 %v794, %v792
      %vm796 = vcmask 0
      %797 = vst.msk [vmem:[#allocation5] sm:$0x1] %vm796, %v795
      %v798 = vld [vmem:[#allocation5] sm:$0x1]
      %s799 = vtos %v798
      %800 = vst [vmem:[#allocation4] sm:$0x1] 4294967295
      // While loop
      $region33: #{knn.1} parent=27 // loop_pre_header
        _
      $region34: #{knn.1} parent=27 // loop_header
        %s802 = sphi 0, %s804
        %p803 = scmp.ge.s32.totalorder %s802, %s799
      $region35: #{knn.1} parent=27 // loop_header_branch
        %806 = sbr.rel (%p803) target = $region39
      $region36: #{knn.1} parent=27 // loop_body
        %v807 = vld [vmem:[#allocation2] sm:$0xff]
        %v808 = vld [vmem:[#allocation2 + $0x8] sm:$0xff]
        %v809 = vld [vmem:[#allocation2 + $0x10] sm:$0xff]
        %v810 = vld [vmem:[#allocation2 + $0x18] sm:$0xff]
        %v811 = vld [vmem:[#allocation2 + $0x20] sm:$0xff]
        %v812 = vld [vmem:[#allocation2 + $0x28] sm:$0xff]
        %v813 = vld [vmem:[#allocation2 + $0x30] sm:$0xff]
        %v814 = vld [vmem:[#allocation2 + $0x38] sm:$0xff]
        %v815 = vld [vmem:[#allocation2 + $0x40] sm:$0xff]
        %v816 = vld [vmem:[#allocation2 + $0x48] sm:$0xff]
        %v817 = vld [vmem:[#allocation2 + $0x50] sm:$0xff]
        %v818 = vld [vmem:[#allocation2 + $0x58] sm:$0xff]
        %v819 = vld [vmem:[#allocation2 + $0x60] sm:$0xff]
        %v820 = vld [vmem:[#allocation2 + $0x68] sm:$0xff]
        %v821 = vld [vmem:[#allocation2 + $0x70] sm:$0xff]
        %v822 = vld [vmem:[#allocation2 + $0x78] sm:$0xff]
        %v823 = vld [vmem:[#allocation4] sm:$0x1]
        %v824 = vlaneseq
        %v825 = vshrl.u32 %v824, 7
        %v826 = vsub.s32 0, %v825
        %v827 = vrot.slane %v823, %v826
        %vm828 = vcmp.gt.s32.totalorder %v807, %v827
        %vm829 = vcmp.gt.s32.totalorder %v808, %v827
        %vm830 = vcmp.gt.s32.totalorder %v809, %v827
        %vm831 = vcmp.gt.s32.totalorder %v810, %v827
        %vm832 = vcmp.gt.s32.totalorder %v811, %v827
        %vm833 = vcmp.gt.s32.totalorder %v812, %v827
        %vm834 = vcmp.gt.s32.totalorder %v813, %v827
        %vm835 = vcmp.gt.s32.totalorder %v814, %v827
        %vm836 = vcmp.gt.s32.totalorder %v815, %v827
        %vm837 = vcmp.gt.s32.totalorder %v816, %v827
        %vm838 = vcmp.gt.s32.totalorder %v817, %v827
        %vm839 = vcmp.gt.s32.totalorder %v818, %v827
        %vm840 = vcmp.gt.s32.totalorder %v819, %v827
        %vm841 = vcmp.gt.s32.totalorder %v820, %v827
        %vm842 = vcmp.gt.s32.totalorder %v821, %v827
        %vm843 = vcmp.gt.s32.totalorder %v822, %v827
        %v844 = vsel %vm828, %v807, 2147483647
        %v845 = vsel %vm829, %v808, 2147483647
        %v846 = vsel %vm830, %v809, 2147483647
        %v847 = vsel %vm831, %v810, 2147483647
        %v848 = vsel %vm832, %v811, 2147483647
        %v849 = vsel %vm833, %v812, 2147483647
        %v850 = vsel %vm834, %v813, 2147483647
        %v851 = vsel %vm835, %v814, 2147483647
        %v852 = vsel %vm836, %v815, 2147483647
        %v853 = vsel %vm837, %v816, 2147483647
        %v854 = vsel %vm838, %v817, 2147483647
        %v855 = vsel %vm839, %v818, 2147483647
        %v856 = vsel %vm840, %v819, 2147483647
        %v857 = vsel %vm841, %v820, 2147483647
        %v858 = vsel %vm842, %v821, 2147483647
        %v859 = vsel %vm843, %v822, 2147483647
        %vm860 = vcmp.lt.s32.totalorder %v844, %v848
        %v861 = vsel %vm860, %v844, %v848
        %vm862 = vcmp.lt.s32.totalorder %v845, %v849
        %v863 = vsel %vm862, %v845, %v849
        %vm864 = vcmp.lt.s32.totalorder %v846, %v850
        %v865 = vsel %vm864, %v846, %v850
        %vm866 = vcmp.lt.s32.totalorder %v847, %v851
        %v867 = vsel %vm866, %v847, %v851
        %vm868 = vcmp.lt.s32.totalorder %v861, %v852
        %v869 = vsel %vm868, %v861, %v852
        %vm870 = vcmp.lt.s32.totalorder %v863, %v853
        %v871 = vsel %vm870, %v863, %v853
        %vm872 = vcmp.lt.s32.totalorder %v865, %v854
        %v873 = vsel %vm872, %v865, %v854
        %vm874 = vcmp.lt.s32.totalorder %v867, %v855
        %v875 = vsel %vm874, %v867, %v855
        %vm876 = vcmp.lt.s32.totalorder %v869, %v856
        %v877 = vsel %vm876, %v869, %v856
        %vm878 = vcmp.lt.s32.totalorder %v871, %v857
        %v879 = vsel %vm878, %v871, %v857
        %vm880 = vcmp.lt.s32.totalorder %v873, %v858
        %v881 = vsel %vm880, %v873, %v858
        %vm882 = vcmp.lt.s32.totalorder %v875, %v859
        %v883 = vsel %vm882, %v875, %v859
        %vm884 = vcmp.lt.s32.totalorder %v877, %v879
        %v885 = vsel %vm884, %v877, %v879
        %vm886 = vcmp.lt.s32.totalorder %v881, %v883
        %v887 = vsel %vm886, %v881, %v883
        %vm888 = vcmp.lt.s32.totalorder %v885, %v887
        %v889 = vsel %vm888, %v885, %v887
        %v890 = vrot.slane %v889, 4
        %vm891 = vcmp.lt.s32.totalorder %v889, %v890
        %v892 = vsel %vm891, %v889, %v890
        %v893 = vrot.slane %v892, 2
        %vm894 = vcmp.lt.s32.totalorder %v892, %v893
        %v895 = vsel %vm894, %v892, %v893
        %v896 = vrot.slane %v895, 1
        %vm897 = vcmp.lt.s32.totalorder %v895, %v896
        %v898 = vsel %vm897, %v895, %v896
        %899 = vst [vmem:[#allocation4] sm:$0x1] %v898
        %v900 = vld [vmem:[#allocation3] sm:$0xff]
        %v901 = vld [vmem:[#allocation3 + $0x8] sm:$0xff]
        %v902 = vld [vmem:[#allocation3 + $0x10] sm:$0xff]
        %v903 = vld [vmem:[#allocation3 + $0x18] sm:$0xff]
        %vm904 = vcmp.gt.s32.totalorder %v900, %v901
        %v905 = vsel %vm904, %v900, %v901
        %vm906 = vcmp.gt.s32.totalorder %v902, %v903
        %v907 = vsel %vm906, %v902, %v903
        %vm908 = vcmp.gt.s32.totalorder %v905, %v907
        %v909 = vsel %vm908, %v905, %v907
        %v910 = vrot.slane %v909, 4
        %vm911 = vcmp.gt.s32.totalorder %v909, %v910
        %v912 = vsel %vm911, %v909, %v910
        %v913 = vrot.slane %v912, 2
        %vm914 = vcmp.gt.s32.totalorder %v912, %v913
        %v915 = vsel %vm914, %v912, %v913
        %v916 = vrot.slane %v915, 1
        %vm917 = vcmp.gt.s32.totalorder %v915, %v916
        %v918 = vsel %vm917, %v915, %v916
        %vm919 = vcmp.eq.s32.totalorder %v900, %v918
        %vm920 = vcmp.eq.s32.totalorder %v901, %v918
        %vm921 = vcmp.eq.s32.totalorder %v902, %v918
        %vm922 = vcmp.eq.s32.totalorder %v903, %v918
        %v923 = vsel %vm919, %v567, 32
        %v924 = vsel %vm920, %v568, 32
        %v925 = vsel %vm921, %v569, 32
        %v926 = vsel %vm922, %v570, 32
        %vm927 = vcmp.lt.s32.totalorder %v923, %v924
        %v928 = vsel %vm927, %v923, %v924
        %vm929 = vcmp.lt.s32.totalorder %v925, %v926
        %v930 = vsel %vm929, %v925, %v926
        %vm931 = vcmp.lt.s32.totalorder %v928, %v930
        %v932 = vsel %vm931, %v928, %v930
        %v933 = vrot.slane %v932, 4
        %vm934 = vcmp.lt.s32.totalorder %v932, %v933
        %v935 = vsel %vm934, %v932, %v933
        %v936 = vrot.slane %v935, 2
        %vm937 = vcmp.lt.s32.totalorder %v935, %v936
        %v938 = vsel %vm937, %v935, %v936
        %v939 = vrot.slane %v938, 1
        %vm940 = vcmp.lt.s32.totalorder %v938, %v939
        %v941 = vsel %vm940, %v938, %v939
        %vm942 = vcmp.eq.s32.totalorder %v567, %v941
        %vm943 = vcmp.eq.s32.totalorder %v568, %v941
        %vm944 = vcmp.eq.s32.totalorder %v569, %v941
        %vm945 = vcmp.eq.s32.totalorder %v570, %v941
        %vm946 = vcmp.lt.s32.totalorder %v898, %v918
        %v947 = vsel %vm946, 1, 0
        %vm948 = vcmp.eq.s32.totalorder %v947, 1
        %vm949 = vmand %vm942, %vm948
        %vm950 = vmand %vm943, %vm948
        %vm951 = vmand %vm944, %vm948
        %vm952 = vmand %vm945, %vm948
        %v953 = vsel %vm949, %v898, %v900
        %v954 = vsel %vm950, %v898, %v901
        %v955 = vsel %vm951, %v898, %v902
        %v956 = vsel %vm952, %v898, %v903
        %957 = vst [vmem:[#allocation3] sm:$0xff] %v953
        %958 = vst [vmem:[#allocation3 + $0x8] sm:$0xff] %v954
        %959 = vst [vmem:[#allocation3 + $0x10] sm:$0xff] %v955
        %960 = vst [vmem:[#allocation3 + $0x18] sm:$0xff] %v956
        %v961 = vand.u32 %v898, 127
        %v962 = vadd.s32 %v631, %v961
        %v963 = vld [vmem:[%s198] sm:$0xff]
        %v964 = vld [vmem:[%s198 + $0x8] sm:$0xff]
        %v965 = vld [vmem:[%s198 + $0x10] sm:$0xff]
        %v966 = vld [vmem:[%s198 + $0x18] sm:$0xff]
        %v967 = vsel %vm949, %v962, %v963
        %v968 = vsel %vm950, %v962, %v964
        %v969 = vsel %vm951, %v962, %v965
        %v970 = vsel %vm952, %v962, %v966
        %971 = vst [vmem:[%s198] sm:$0xff] %v967
        %972 = vst [vmem:[%s198 + $0x8] sm:$0xff] %v968
        %973 = vst [vmem:[%s198 + $0x10] sm:$0xff] %v969
        %974 = vst [vmem:[%s198 + $0x18] sm:$0xff] %v970
      $region37: #{knn.1} parent=27 // loop_footer
        %s804 = sadd.s32 %s802, 1
      $region38: #{knn.1} parent=27 // loop_footer_branch
        %801 = sbr.rel target = $region34
      $region39: #{knn.1} parent=27 // loop_exit
        _
      %p975 = scmp.lt.s32.totalorder %s18, 1
      %s976 = scalar_select %p975, %s18, 1
      %p977 = scmp.lt.s32.totalorder %s19, 0
      %s978 = scalar_select %p977, %s19, 0
      %s979 = smul.addr %s976, 4
      %s980 = sadd.s32 %s978, %s979
      %s981 = smul.addr %s980, 8
      %s982 = scalar_lea.vmem %s2, %s981
      // Predicated region
      $region40: #{knn.1} parent=27 // pred_check
        %p983 = pneg %p106
      $region41: #{knn.1} parent=27 // pred_check_branch
        %985 = sbr.rel (%p983) target = $region43
      $region42: #{knn.1} parent=27 // pred_region
        _
      $region43: #{knn.1} parent=27 // pred_fallthru
        _
    $region28: #{knn.1} parent=5 // pred_fallthru
      _
    %p986 = scmp.le.s32.totalorder 2, %s8
    // Predicated region
    $region44: #{knn.1} parent=5 // pred_check
      %p987 = pneg %p986
    $region45: #{knn.1} parent=5 // pred_check_branch
      %989 = sbr.rel (%p987) target = $region47
    $region46: #{knn.1} parent=5 // pred_region
      %s990 = ssub.s32 %s8, 2
      // Predicated region
      $region48: #{knn.1} parent=46 // pred_check
        %p991 = pneg %p112
      $region49: #{knn.1} parent=46 // pred_check_branch
        %993 = sbr.rel (%p991) target = $region51
      $region50: #{knn.1} parent=46 // pred_region
        %p994 = scmp.lt.s32.totalorder %s21, 1
        %s995 = scalar_select %p994, %s21, 1
        %p996 = scmp.lt.s32.totalorder %s22, 0
        %s997 = scalar_select %p996, %s22, 0
        %s998 = smul.addr %s995, 4
        %s999 = sadd.s32 %s997, %s998
        %s1000 = smul.addr %s999, 8
        %s1001 = scalar_lea.vmem %s2, %s1000
      $region51: #{knn.1} parent=46 // pred_fallthru
        _
    $region47: #{knn.1} parent=5 // pred_fallthru
      _
  $region6: #{knn.1} parent=0 // loop_footer
    %s12 = sadd.s32 1, %s8
  $region7: #{knn.1} parent=0 // loop_footer_branch
    %7 = sbr.rel target = $region3
  $region8: #{knn.1} parent=0 // loop_exit
    _

</llo_original>
